<compile_context>
chip_gen: v5e
topology: v5e:2x2
jax: 0.10.0
libtpu: 0.0.40
codegen_flags: <defaults>
</compile_context>

<pallas_src>
import math

import jax
import jax.numpy as jnp
from jax.experimental import pallas as pl
from jax.experimental.pallas import tpu as pltpu


def _round_up(v, m):
    return (v + m - 1) // m * m


def _vmem_budget_bytes():
    """Generation-aware per-core VMEM budget with ~30% headroom.

    128 MiB parts (v5e/v6e) -> ~90 MiB; 64 MiB per-TC (v7x) -> ~45 MiB.
    Falls back to the smallest (v7x per-TC) size if the query is unavailable.
    """
    try:
        cap = int(pltpu.get_tpu_info().vmem_capacity_bytes)
    except Exception:
        cap = 64 << 20
    return max(16 << 20, min(int(cap * 0.70), 96 << 20))


def _nonlinear_kernel(x_ref, w1_ref, b1_ref, w2_ref, b2_ref, o_ref):
    # linear1 on the MXU: bf16 operands, f32 accumulation.
    h = jnp.dot(x_ref[...].astype(jnp.bfloat16), w1_ref[...],
                preferred_element_type=jnp.float32)
    # bias add + ReLU fused, immediately narrowed to bf16 (halves the live
    # intermediate and is already the second matmul's operand dtype).
    h = jnp.maximum(h + b1_ref[...], 0.0).astype(jnp.bfloat16)
    # linear2 on the MXU, f32 accumulation; bias add in f32, store in out dtype.
    y = jnp.dot(h, w2_ref[...], preferred_element_type=jnp.float32)
    o_ref[...] = (y + b2_ref[...]).astype(o_ref.dtype)


def make_nonlinear_params(w1, b1, w2, b2):
    """Cast/reshape the static parameters ONCE; cache and reuse per forward.

    w1: [d_in, d_hid], b1: [d_hid], w2: [d_hid, d_out], b2: [d_out].
    Weights go to bf16 (MXU-native, half the DMA bytes); biases stay f32.
    """
    return (w1.astype(jnp.bfloat16),
            b1.reshape(1, -1).astype(jnp.float32),
            w2.astype(jnp.bfloat16),
            b2.reshape(1, -1).astype(jnp.float32))


# Flipped to False (once) if this JAX build rejects pl.Buffered(1) on a
# top-level pallas_call BlockSpec; we then fall back to default double buffers.
_WEIGHTS_SINGLE_BUFFERED = True


def nonlinear_forward(x, params, *, tile_rows=None, out_dtype=None):
    """x: [N, d_in]; params from make_nonlinear_params -> [N, d_out].

    Pass out_dtype=jnp.bfloat16 to halve output DMA bytes when the surrounding
    model computes in bf16; defaults to x.dtype to match the PyTorch module.
    """
    global _WEIGHTS_SINGLE_BUFFERED

    w1, b1, w2, b2 = params
    n, d_in = x.shape
    d_hid = w1.shape[1]
    d_out = w2.shape[1]
    out_dtype = x.dtype if out_dtype is None else out_dtype
    x_bytes = jnp.dtype(x.dtype).itemsize
    out_bytes = jnp.dtype(out_dtype).itemsize

    weight_bufs = 1 if _WEIGHTS_SINGLE_BUFFERED else 2

    def _vmem_bytes(tr):
        return (2 * tr * d_in * x_bytes                              # x tile (double-buffered)
                + weight_bufs * (d_in * d_hid + d_hid * d_out) * 2   # bf16 weights (resident)
                + weight_bufs * (d_hid + d_out) * 4                  # f32 biases
                + 2 * tr * d_out * out_bytes                         # out tile (double-buffered)
                + tr * d_hid * (4 + 2))                              # f32 dot result + bf16 h

    budget = _vmem_budget_bytes()

    # Row tile: multiple of 16 sublanes (bf16 packs 2 rows/sublane), capped by
    # batch size and the per-core VMEM budget.  Large tiles amortize the
    # ~0.35us/step grid overhead and push the kernel toward the HBM roofline.
    if tile_rows is None:
        tile_rows = 1024
    tile_rows = max(16, _round_up(min(tile_rows, n), 16))
    while _vmem_bytes(tile_rows) > budget and tile_rows > 16:
        tile_rows = max(16, _round_up(tile_rows // 2, 16))
    # TODO(synk): add a K-grid axis ("arbitrary", last) with an f32 VMEM accumulator
    # if d_in/d_hid grow so large that resident W1/W2 no longer fit per-TC VMEM
    # (hits the 64 MiB wall ~2x sooner on v7x than on v6e).

    n_p = _round_up(n, tile_rows)
    grid = (n_p // tile_rows,)

    # Only touch x when the row count doesn't tile evenly (padded rows yield
    # relu(b1) @ W2 + b2 garbage and are sliced off below — never reuse out_p
    # unsliced, e.g. via input_output_aliases).
    x_p = x if n_p == n else jnp.pad(x, ((0, n_p - n), (0, 0)))

    flops = 2 * n_p * (d_in * d_hid + d_hid * d_out)
    bytes_accessed = (n_p * d_in * x_bytes
                      + (d_in * d_hid + d_hid * d_out) * 2
                      + (d_hid + d_out) * 4
                      + n_p * d_out * out_bytes)

    def _weight_spec(shape, single_buffer):
        # Constant index_map -> block fetched once; a single buffer suffices.
        if single_buffer:
            return pl.BlockSpec(shape, lambda i: (0, 0), pipeline_mode=pl.Buffered(1))
        return pl.BlockSpec(shape, lambda i: (0, 0))

    def _call(single_buffer):
        return pl.pallas_call(
            _nonlinear_kernel,
            out_shape=jax.ShapeDtypeStruct((n_p, d_out), out_dtype),
            grid_spec=pltpu.PrefetchScalarGridSpec(
                num_scalar_prefetch=0,
                grid=grid,
                in_specs=[
                    pl.BlockSpec((tile_rows, d_in), lambda i: (i, 0)),  # x row-tile
                    _weight_spec((d_in, d_hid), single_buffer),         # W1 (resident)
                    _weight_spec((1, d_hid), single_buffer),            # b1
                    _weight_spec((d_hid, d_out), single_buffer),        # W2 (resident)
                    _weight_spec((1, d_out), single_buffer),            # b2
                ],
                out_specs=pl.BlockSpec((tile_rows, d_out), lambda i: (i, 0)),
            ),
            compiler_params=pltpu.CompilerParams(
                dimension_semantics=("parallel",),   # row tiles shard across TCs on v7x
                vmem_limit_bytes=int(budget),
            ),
            cost_estimate=pl.CostEstimate(
                flops=flops, transcendentals=0, bytes_accessed=bytes_accessed),
        )(x_p, w1, b1, w2, b2)

    if _WEIGHTS_SINGLE_BUFFERED:
        try:
            out_p = _call(True)
        except Exception:
            _WEIGHTS_SINGLE_BUFFERED = False
            out_p = _call(False)
    else:
        out_p = _call(False)

    return out_p if n_p == n else out_p[:n]


def xavier_uniform(key, fan_in, fan_out, gain):
    # matches torch.nn.init.xavier_uniform_ with gain=calculate_gain('relu')=sqrt(2)
    bound = gain * math.sqrt(6.0 / (fan_in + fan_out))
    # produce [fan_in, fan_out] (transposed vs PyTorch's [out, in] layout)
    return jax.random.uniform(key, (fan_in, fan_out), jnp.float32, -bound, bound)


if __name__ == "__main__":
    # small shapes consistent with the module: batch=64, input=32, hidden=64, output=16
    N, D_IN, D_HID, D_OUT = 64, 32, 64, 16
    gain = math.sqrt(2.0)  # nn.init.calculate_gain('relu')

    key = jax.random.PRNGKey(0)
    kx, k1, k2 = jax.random.split(key, 3)

    x = jax.random.normal(kx, (N, D_IN), jnp.float32)
    w1 = xavier_uniform(k1, D_IN, D_HID, gain)
    b1 = jnp.zeros((D_HID,), jnp.float32)     # init.constant_(bias, 0.0)
    w2 = xavier_uniform(k2, D_HID, D_OUT, gain)
    b2 = jnp.zeros((D_OUT,), jnp.float32)

    # Prepare (cast) the static parameters exactly once; reuse every forward.
    params = make_nonlinear_params(w1, b1, w2, b2)

    # tile_rows=16 -> 4 grid steps, exercising the pipelined (multi-step) path.
    out = nonlinear_forward(x, params, tile_rows=16)
    out = jax.block_until_ready(out)

    # pure-JAX f32 reference check (loose tolerance: kernel uses bf16 MXU
    # operands with f32 accumulation)
    ref = jnp.maximum(x @ w1 + b1[None, :], 0.0) @ w2 + b2[None, :]
    assert out.shape == (N, D_OUT)
    assert jnp.allclose(out, ref, atol=5e-2, rtol=5e-2), float(jnp.max(jnp.abs(out - ref)))

    print("KERNEL_OK")
</pallas_src>

<mosaic_0001>
module attributes {stable_mosaic.version = 11 : i64} {
  func.func @_nonlinear_kernel(%arg0: i32, %arg1: memref<16x32xf32, #tpu.memory_space<vmem>>, %arg2: memref<32x64xbf16, #tpu.memory_space<vmem>>, %arg3: memref<1x64xf32, #tpu.memory_space<vmem>>, %arg4: memref<64x16xbf16, #tpu.memory_space<vmem>>, %arg5: memref<1x16xf32, #tpu.memory_space<vmem>>, %arg6: memref<16x16xf32, #tpu.memory_space<vmem>>) attributes {dimension_semantics = [#tpu.dimension_semantics<parallel>], iteration_bounds = array<i64: 4>, scalar_prefetch = 0 : i64, scratch_operands = 0 : i64, tpu.core_type = #tpu.core_type<tc>, window_params = [{transform_indices = @transform_0, window_bounds = array<i64: 16, 32>}, {pipeline_mode = #tpu.pipeline_mode<synchronous>, transform_indices = @transform_1, window_bounds = array<i64: 32, 64>}, {pipeline_mode = #tpu.pipeline_mode<synchronous>, transform_indices = @transform_2, window_bounds = array<i64: 1, 64>}, {pipeline_mode = #tpu.pipeline_mode<synchronous>, transform_indices = @transform_3, window_bounds = array<i64: 64, 16>}, {pipeline_mode = #tpu.pipeline_mode<synchronous>, transform_indices = @transform_4, window_bounds = array<i64: 1, 16>}, {transform_indices = @transform_5, window_bounds = array<i64: 16, 16>}]} {
    %c0 = arith.constant 0 : index
    %c0_0 = arith.constant 0 : index
    %0 = vector.load %arg1[%c0, %c0_0] : memref<16x32xf32, #tpu.memory_space<vmem>>, vector<16x32xf32>
    %1 = arith.truncf %0 : vector<16x32xf32> to vector<16x32xbf16>
    %c0_1 = arith.constant 0 : index
    %c0_2 = arith.constant 0 : index
    %2 = vector.load %arg2[%c0_1, %c0_2] : memref<32x64xbf16, #tpu.memory_space<vmem>>, vector<32x64xbf16>
    %cst = arith.constant dense<0.000000e+00> : vector<16x64xf32>
    %3 = tpu.matmul %1, %2, %cst {dimension_numbers = #tpu.dot_dimension_numbers<[1], [0], [0], [1], [0, 0, 1, 1], [], []>} : vector<16x32xbf16>, vector<32x64xbf16>, vector<16x64xf32> -> vector<16x64xf32>
    %c0_3 = arith.constant 0 : index
    %c0_4 = arith.constant 0 : index
    %4 = vector.load %arg3[%c0_3, %c0_4] : memref<1x64xf32, #tpu.memory_space<vmem>>, vector<1x64xf32>
    %5 = vector.broadcast %4 : vector<1x64xf32> to vector<16x64xf32>
    %6 = arith.addf %3, %5 : vector<16x64xf32>
    %cst_5 = arith.constant 0.000000e+00 : f32
    %7 = vector.broadcast %cst_5 : f32 to vector<16x64xf32>
    %8 = arith.maximumf %6, %7 : vector<16x64xf32>
    %9 = arith.truncf %8 : vector<16x64xf32> to vector<16x64xbf16>
    %c0_6 = arith.constant 0 : index
    %c0_7 = arith.constant 0 : index
    %10 = vector.load %arg4[%c0_6, %c0_7] : memref<64x16xbf16, #tpu.memory_space<vmem>>, vector<64x16xbf16>
    %cst_8 = arith.constant dense<0.000000e+00> : vector<16x16xf32>
    %11 = tpu.matmul %9, %10, %cst_8 {dimension_numbers = #tpu.dot_dimension_numbers<[1], [0], [0], [1], [0, 0, 1, 1], [], []>} : vector<16x64xbf16>, vector<64x16xbf16>, vector<16x16xf32> -> vector<16x16xf32>
    %c0_9 = arith.constant 0 : index
    %c0_10 = arith.constant 0 : index
    %12 = vector.load %arg5[%c0_9, %c0_10] : memref<1x16xf32, #tpu.memory_space<vmem>>, vector<1x16xf32>
    %13 = vector.broadcast %12 : vector<1x16xf32> to vector<16x16xf32>
    %14 = arith.addf %11, %13 : vector<16x16xf32>
    %c0_11 = arith.constant 0 : index
    %c0_12 = arith.constant 0 : index
    %15 = vector.load %arg6[%c0_11, %c0_12] : memref<16x16xf32, #tpu.memory_space<vmem>>, vector<16x16xf32>
    tpu.vector_store %arg6[%c0_11, %c0_12], %14 {strides = array<i32>} : memref<16x16xf32, #tpu.memory_space<vmem>>, vector<16x16xf32>,
    return
  }
  func.func @transform_0(%arg0: i32) -> (i32, i32) {
    %c0_i32 = arith.constant 0 : i32
    %c0_i32_0 = arith.constant 0 : i32
    return %arg0, %c0_i32 : i32, i32
  }
  func.func @transform_1(%arg0: i32) -> (i32, i32) {
    %c0_i32 = arith.constant 0 : i32
    %c0_i32_0 = arith.constant 0 : i32
    %c0_i32_1 = arith.constant 0 : i32
    return %c0_i32, %c0_i32_0 : i32, i32
  }
  func.func @transform_2(%arg0: i32) -> (i32, i32) {
    %c0_i32 = arith.constant 0 : i32
    %c0_i32_0 = arith.constant 0 : i32
    %c0_i32_1 = arith.constant 0 : i32
    return %c0_i32, %c0_i32_0 : i32, i32
  }
  func.func @transform_3(%arg0: i32) -> (i32, i32) {
    %c0_i32 = arith.constant 0 : i32
    %c0_i32_0 = arith.constant 0 : i32
    %c0_i32_1 = arith.constant 0 : i32
    return %c0_i32, %c0_i32_0 : i32, i32
  }
  func.func @transform_4(%arg0: i32) -> (i32, i32) {
    %c0_i32 = arith.constant 0 : i32
    %c0_i32_0 = arith.constant 0 : i32
    %c0_i32_1 = arith.constant 0 : i32
    return %c0_i32, %c0_i32_0 : i32, i32
  }
  func.func @transform_5(%arg0: i32) -> (i32, i32) {
    %c0_i32 = arith.constant 0 : i32
    %c0_i32_0 = arith.constant 0 : i32
    return %arg0, %c0_i32 : i32, i32
  }
}

module attributes {stable_mosaic.version = 11 : i64} {
  func.func @_nonlinear_kernel(%arg0: i32, %arg1: memref<16x32xf32, #tpu.memory_space<vmem>>, %arg2: memref<32x64xbf16, #tpu.memory_space<vmem>>, %arg3: memref<1x64xf32, #tpu.memory_space<vmem>>, %arg4: memref<64x16xbf16, #tpu.memory_space<vmem>>, %arg5: memref<1x16xf32, #tpu.memory_space<vmem>>, %arg6: memref<16x16xf32, #tpu.memory_space<vmem>>) attributes {dimension_semantics = [#tpu.dimension_semantics<parallel>], iteration_bounds = array<i64: 4>, scalar_prefetch = 0 : i64, scratch_operands = 0 : i64, tpu.core_type = #tpu.core_type<tc>, window_params = [{transform_indices = @transform_0, window_bounds = array<i64: 16, 32>}, {pipeline_mode = #tpu.pipeline_mode<synchronous>, transform_indices = @transform_1, window_bounds = array<i64: 32, 64>}, {pipeline_mode = #tpu.pipeline_mode<synchronous>, transform_indices = @transform_2, window_bounds = array<i64: 1, 64>}, {pipeline_mode = #tpu.pipeline_mode<synchronous>, transform_indices = @transform_3, window_bounds = array<i64: 64, 16>}, {pipeline_mode = #tpu.pipeline_mode<synchronous>, transform_indices = @transform_4, window_bounds = array<i64: 1, 16>}, {transform_indices = @transform_5, window_bounds = array<i64: 16, 16>}]} {
    %c0 = arith.constant 0 : index
    %c0_0 = arith.constant 0 : index
    %0 = vector.load %arg1[%c0, %c0_0] : memref<16x32xf32, #tpu.memory_space<vmem>>, vector<16x32xf32>
    %1 = arith.truncf %0 : vector<16x32xf32> to vector<16x32xbf16>
    %c0_1 = arith.constant 0 : index
    %c0_2 = arith.constant 0 : index
    %2 = vector.load %arg2[%c0_1, %c0_2] : memref<32x64xbf16, #tpu.memory_space<vmem>>, vector<32x64xbf16>
    %cst = arith.constant dense<0.000000e+00> : vector<16x64xf32>
    %3 = tpu.matmul %1, %2, %cst {dimension_numbers = #tpu.dot_dimension_numbers<[1], [0], [0], [1], [0, 0, 1, 1], [], []>} : vector<16x32xbf16>, vector<32x64xbf16>, vector<16x64xf32> -> vector<16x64xf32>
    %c0_3 = arith.constant 0 : index
    %c0_4 = arith.constant 0 : index
    %4 = vector.load %arg3[%c0_3, %c0_4] : memref<1x64xf32, #tpu.memory_space<vmem>>, vector<1x64xf32>
    %5 = vector.broadcast %4 : vector<1x64xf32> to vector<16x64xf32>
    %6 = arith.addf %3, %5 : vector<16x64xf32>
    %cst_5 = arith.constant 0.000000e+00 : f32
    %7 = vector.broadcast %cst_5 : f32 to vector<16x64xf32>
    %8 = arith.maximumf %6, %7 : vector<16x64xf32>
    %9 = arith.truncf %8 : vector<16x64xf32> to vector<16x64xbf16>
    %c0_6 = arith.constant 0 : index
    %c0_7 = arith.constant 0 : index
    %10 = vector.load %arg4[%c0_6, %c0_7] : memref<64x16xbf16, #tpu.memory_space<vmem>>, vector<64x16xbf16>
    %cst_8 = arith.constant dense<0.000000e+00> : vector<16x16xf32>
    %11 = tpu.matmul %9, %10, %cst_8 {dimension_numbers = #tpu.dot_dimension_numbers<[1], [0], [0], [1], [0, 0, 1, 1], [], []>} : vector<16x64xbf16>, vector<64x16xbf16>, vector<16x16xf32> -> vector<16x16xf32>
    %c0_9 = arith.constant 0 : index
    %c0_10 = arith.constant 0 : index
    %12 = vector.load %arg5[%c0_9, %c0_10] : memref<1x16xf32, #tpu.memory_space<vmem>>, vector<1x16xf32>
    %13 = vector.broadcast %12 : vector<1x16xf32> to vector<16x16xf32>
    %14 = arith.addf %11, %13 : vector<16x16xf32>
    %c0_11 = arith.constant 0 : index
    %c0_12 = arith.constant 0 : index
    %15 = vector.load %arg6[%c0_11, %c0_12] : memref<16x16xf32, #tpu.memory_space<vmem>>, vector<16x16xf32>
    tpu.vector_store %arg6[%c0_11, %c0_12], %14 {strides = array<i32>} : memref<16x16xf32, #tpu.memory_space<vmem>>, vector<16x16xf32>,
    return
  }
  func.func @transform_0(%arg0: i32) -> (i32, i32) {
    %c0_i32 = arith.constant 0 : i32
    %c0_i32_0 = arith.constant 0 : i32
    return %arg0, %c0_i32 : i32, i32
  }
  func.func @transform_1(%arg0: i32) -> (i32, i32) {
    %c0_i32 = arith.constant 0 : i32
    %c0_i32_0 = arith.constant 0 : i32
    %c0_i32_1 = arith.constant 0 : i32
    return %c0_i32, %c0_i32_0 : i32, i32
  }
  func.func @transform_2(%arg0: i32) -> (i32, i32) {
    %c0_i32 = arith.constant 0 : i32
    %c0_i32_0 = arith.constant 0 : i32
    %c0_i32_1 = arith.constant 0 : i32
    return %c0_i32, %c0_i32_0 : i32, i32
  }
  func.func @transform_3(%arg0: i32) -> (i32, i32) {
    %c0_i32 = arith.constant 0 : i32
    %c0_i32_0 = arith.constant 0 : i32
    %c0_i32_1 = arith.constant 0 : i32
    return %c0_i32, %c0_i32_0 : i32, i32
  }
  func.func @transform_4(%arg0: i32) -> (i32, i32) {
    %c0_i32 = arith.constant 0 : i32
    %c0_i32_0 = arith.constant 0 : i32
    %c0_i32_1 = arith.constant 0 : i32
    return %c0_i32, %c0_i32_0 : i32, i32
  }
  func.func @transform_5(%arg0: i32) -> (i32, i32) {
    %c0_i32 = arith.constant 0 : i32
    %c0_i32_0 = arith.constant 0 : i32
    return %arg0, %c0_i32 : i32, i32
  }
}

</mosaic_0001>

<llo_original>
// kernel: tpu_custom_call.1
$region0: #{tpu_custom_call.1}
  #allocation0 [shape = 'u32[]', space=smem, size = 0x4, offset = 0x4, fixed_abs, tag = 'smem constant byte address 0x4 - core index']
  #allocation1 [shape = 'u32[72,128]{1,0:T(1,128)}', space=vmem, size = 0x9000, scoped, tag = 'internal scratch']
  %s0 = inlined_call_operand.vmem [shape: f32[64,32], index: 0, kind: input, shape index: {}]
  %s1 = inlined_call_operand.vmem [shape: bf16[32,64], index: 1, kind: input, shape index: {}]
  %s2 = inlined_call_operand.vmem [shape: f32[1,64], index: 2, kind: input, shape index: {}]
  %s3 = inlined_call_operand.vmem [shape: bf16[64,16], index: 3, kind: input, shape index: {}]
  %s4 = inlined_call_operand.vmem [shape: f32[1,16], index: 4, kind: input, shape index: {}]
  %s5 = inlined_call_operand.vmem [shape: f32[64,16], index: 5, kind: output, shape index: {}]
  %s6 = sld [smem:[#allocation0]]
  $region53: #{tpu_custom_call.1} parent=0
    _
  %s8 = ssub.s32 1, %s6
  %s9 = scalar_select 0, %s8, %s6
  loop: start=0, step=1, limit=6
  $region2: #{tpu_custom_call.1} parent=0 // loop_pre_header
    _
  $region3: #{tpu_custom_call.1} parent=0 // loop_header
    %s11 = sphi 0, %s15
    %p12 = scmp.ge.s32.totalorder %s11, 6
    %s21 = sphi 0, %s23
    %s24 = sphi 0, %s21
    %s25 = sphi 0, %s24
    %s41 = sphi 0, %s25
    %s45 = sphi 0, %s45
    %s47 = sphi 0, %s45
    %s48 = sphi 0, %s47
    %s62 = sphi 0, %s48
    %s66 = sphi 0, %s66
    %s68 = sphi 0, %s66
    %s69 = sphi 0, %s68
    %s83 = sphi 0, %s69
    %s87 = sphi 0, %s87
    %s89 = sphi 0, %s87
    %s90 = sphi 0, %s89
    %s104 = sphi 0, %s90
    %s108 = sphi 0, %s108
    %s110 = sphi 0, %s108
    %s111 = sphi 0, %s110
    %s125 = sphi 0, %s111
    %s131 = sphi 0, %s133
    %s134 = sphi 0, %s131
    %s135 = sphi 0, %s134
    %s151 = sphi 0, %s135
  $region4: #{tpu_custom_call.1} parent=0 // loop_header_branch
    %14 = sbr.rel (%p12) target = $region8
  $region5: #{tpu_custom_call.1} parent=0 // loop_body
    %s16 = ssub.s32 %s11, 1
    %s17 = ssub.s32 %s11, 2
    %s18 = sadd.s32 %s11, 1
    %s19 = ssub.s32 %s11, %s18
    %p20 = scmp.eq.s32.totalorder %s19, 0
    %s22 = sadd.s32 %s21, 1
    %s23 = scalar_select %p20, %s21, %s22
    %p26 = pneg %p20
    %p27 = scmp.eq.s32.totalorder %s11, 3
    %p28 = por %p26, %p27
    %p29 = scmp.ne.s32.totalorder %s21, %s24
    %p30 = scmp.eq.s32.totalorder %s11, 0
    %p31 = por %p29, %p30
    %p32 = scmp.ne.s32.totalorder %s21, %s24
    %p33 = scmp.eq.s32.totalorder %s16, 3
    %p34 = por %p32, %p33
    %p35 = scmp.ne.s32.totalorder %s24, %s25
    %p36 = scmp.eq.s32.totalorder %s16, 0
    %p37 = por %p35, %p36
    %p38 = scmp.ne.s32.totalorder %s24, %s25
    %p39 = scmp.eq.s32.totalorder %s17, 3
    %p40 = por %p38, %p39
    %p42 = scmp.ne.s32.totalorder %s25, %s41
    %p43 = scmp.eq.s32.totalorder %s17, 0
    %p44 = por %p42, %p43
    %s46 = sadd.s32 %s45, 1
    %p49 = scmp.eq.s32.totalorder %s11, 3
    %p50 = scmp.ne.s32.totalorder %s45, %s47
    %p51 = scmp.eq.s32.totalorder %s11, 0
    %p52 = por %p50, %p51
    %p53 = scmp.ne.s32.totalorder %s45, %s47
    %p54 = scmp.eq.s32.totalorder %s16, 3
    %p55 = por %p53, %p54
    %p56 = scmp.ne.s32.totalorder %s47, %s48
    %p57 = scmp.eq.s32.totalorder %s16, 0
    %p58 = por %p56, %p57
    %p59 = scmp.ne.s32.totalorder %s47, %s48
    %p60 = scmp.eq.s32.totalorder %s17, 3
    %p61 = por %p59, %p60
    %p63 = scmp.ne.s32.totalorder %s48, %s62
    %p64 = scmp.eq.s32.totalorder %s17, 0
    %p65 = por %p63, %p64
    %s67 = sadd.s32 %s66, 1
    %p70 = scmp.eq.s32.totalorder %s11, 3
    %p71 = scmp.ne.s32.totalorder %s66, %s68
    %p72 = scmp.eq.s32.totalorder %s11, 0
    %p73 = por %p71, %p72
    %p74 = scmp.ne.s32.totalorder %s66, %s68
    %p75 = scmp.eq.s32.totalorder %s16, 3
    %p76 = por %p74, %p75
    %p77 = scmp.ne.s32.totalorder %s68, %s69
    %p78 = scmp.eq.s32.totalorder %s16, 0
    %p79 = por %p77, %p78
    %p80 = scmp.ne.s32.totalorder %s68, %s69
    %p81 = scmp.eq.s32.totalorder %s17, 3
    %p82 = por %p80, %p81
    %p84 = scmp.ne.s32.totalorder %s69, %s83
    %p85 = scmp.eq.s32.totalorder %s17, 0
    %p86 = por %p84, %p85
    %s88 = sadd.s32 %s87, 1
    %p91 = scmp.eq.s32.totalorder %s11, 3
    %p92 = scmp.ne.s32.totalorder %s87, %s89
    %p93 = scmp.eq.s32.totalorder %s11, 0
    %p94 = por %p92, %p93
    %p95 = scmp.ne.s32.totalorder %s87, %s89
    %p96 = scmp.eq.s32.totalorder %s16, 3
    %p97 = por %p95, %p96
    %p98 = scmp.ne.s32.totalorder %s89, %s90
    %p99 = scmp.eq.s32.totalorder %s16, 0
    %p100 = por %p98, %p99
    %p101 = scmp.ne.s32.totalorder %s89, %s90
    %p102 = scmp.eq.s32.totalorder %s17, 3
    %p103 = por %p101, %p102
    %p105 = scmp.ne.s32.totalorder %s90, %s104
    %p106 = scmp.eq.s32.totalorder %s17, 0
    %p107 = por %p105, %p106
    %s109 = sadd.s32 %s108, 1
    %p112 = scmp.eq.s32.totalorder %s11, 3
    %p113 = scmp.ne.s32.totalorder %s108, %s110
    %p114 = scmp.eq.s32.totalorder %s11, 0
    %p115 = por %p113, %p114
    %p116 = scmp.ne.s32.totalorder %s108, %s110
    %p117 = scmp.eq.s32.totalorder %s16, 3
    %p118 = por %p116, %p117
    %p119 = scmp.ne.s32.totalorder %s110, %s111
    %p120 = scmp.eq.s32.totalorder %s16, 0
    %p121 = por %p119, %p120
    %p122 = scmp.ne.s32.totalorder %s110, %s111
    %p123 = scmp.eq.s32.totalorder %s17, 3
    %p124 = por %p122, %p123
    %p126 = scmp.ne.s32.totalorder %s111, %s125
    %p127 = scmp.eq.s32.totalorder %s17, 0
    %p128 = por %p126, %p127
    %s129 = ssub.s32 %s11, %s18
    %p130 = scmp.eq.s32.totalorder %s129, 0
    %s132 = sadd.s32 %s131, 1
    %s133 = scalar_select %p130, %s131, %s132
    %p136 = pneg %p130
    %p137 = scmp.eq.s32.totalorder %s11, 3
    %p138 = por %p136, %p137
    %p139 = scmp.ne.s32.totalorder %s131, %s134
    %p140 = scmp.eq.s32.totalorder %s11, 0
    %p141 = por %p139, %p140
    %p142 = scmp.ne.s32.totalorder %s131, %s134
    %p143 = scmp.eq.s32.totalorder %s16, 3
    %p144 = por %p142, %p143
    %p145 = scmp.ne.s32.totalorder %s134, %s135
    %p146 = scmp.eq.s32.totalorder %s16, 0
    %p147 = por %p145, %p146
    %p148 = scmp.ne.s32.totalorder %s134, %s135
    %p149 = scmp.eq.s32.totalorder %s17, 3
    %p150 = por %p148, %p149
    %p152 = scmp.ne.s32.totalorder %s135, %s151
    %p153 = scmp.eq.s32.totalorder %s17, 0
    %p154 = por %p152, %p153
    %p155 = scmp.le.s32.totalorder 1, %s11
    %p156 = scmp.lt.s32.totalorder %s11, 5
    %p157 = pnand %p155, %p156
    %p158 = pneg %p157
    // Predicated region
    $region9: #{tpu_custom_call.1} parent=5 // pred_check
      _
    $region10: #{tpu_custom_call.1} parent=5 // pred_check_branch
      %160 = sbr.rel (%p157) target = $region12
    $region11: #{tpu_custom_call.1} parent=5 // pred_region
      %s161 = ssub.s32 %s11, 1
      // Predicated region
      $region13: #{tpu_custom_call.1} parent=11 // pred_check
        %p162 = pneg %p58
      $region14: #{tpu_custom_call.1} parent=11 // pred_check_branch
        %164 = sbr.rel (%p162) target = $region16
      $region15: #{tpu_custom_call.1} parent=11 // pred_region
        _
      $region16: #{tpu_custom_call.1} parent=11 // pred_fallthru
        _
      // Predicated region
      $region17: #{tpu_custom_call.1} parent=11 // pred_check
        %p165 = pneg %p79
      $region18: #{tpu_custom_call.1} parent=11 // pred_check_branch
        %167 = sbr.rel (%p165) target = $region20
      $region19: #{tpu_custom_call.1} parent=11 // pred_region
        _
      $region20: #{tpu_custom_call.1} parent=11 // pred_fallthru
        _
      // Predicated region
      $region21: #{tpu_custom_call.1} parent=11 // pred_check
        %p168 = pneg %p100
      $region22: #{tpu_custom_call.1} parent=11 // pred_check_branch
        %170 = sbr.rel (%p168) target = $region24
      $region23: #{tpu_custom_call.1} parent=11 // pred_region
        _
      $region24: #{tpu_custom_call.1} parent=11 // pred_fallthru
        _
      // Predicated region
      $region25: #{tpu_custom_call.1} parent=11 // pred_check
        %p171 = pneg %p121
      $region26: #{tpu_custom_call.1} parent=11 // pred_check_branch
        %173 = sbr.rel (%p171) target = $region28
      $region27: #{tpu_custom_call.1} parent=11 // pred_region
        _
      $region28: #{tpu_custom_call.1} parent=11 // pred_fallthru
        _
    $region12: #{tpu_custom_call.1} parent=5 // pred_fallthru
      _
    %p174 = scmp.lt.s32.totalorder %s11, 4
    // Predicated region
    $region29: #{tpu_custom_call.1} parent=5 // pred_check
      %p175 = pneg %p174
    $region30: #{tpu_custom_call.1} parent=5 // pred_check_branch
      %177 = sbr.rel (%p175) target = $region32
    $region31: #{tpu_custom_call.1} parent=5 // pred_region
      // Predicated region
      $region33: #{tpu_custom_call.1} parent=31 // pred_check
        %p178 = pneg %p31
      $region34: #{tpu_custom_call.1} parent=31 // pred_check_branch
        %180 = sbr.rel (%p178) target = $region36
      $region35: #{tpu_custom_call.1} parent=31 // pred_region
        %s181 = smul.u32 2, %s11
        %p182 = scmp.lt.s32.totalorder %s181, 7
        %s183 = scalar_select %p182, %s181, 7
        %s184 = smul.addr %s183, 8
        %s185 = scalar_lea.vmem %s0, %s184
        %s186 = smul.u32 2, %s11
      $region36: #{tpu_custom_call.1} parent=31 // pred_fallthru
        _
    $region32: #{tpu_custom_call.1} parent=5 // pred_fallthru
      _
    %p187 = scmp.le.s32.totalorder 1, %s11
    %p188 = scmp.lt.s32.totalorder %s11, 5
    %p189 = pnand %p187, %p188
    %p190 = pneg %p189
    // Predicated region
    $region37: #{tpu_custom_call.1} parent=5 // pred_check
      _
    $region38: #{tpu_custom_call.1} parent=5 // pred_check_branch
      %192 = sbr.rel (%p189) target = $region40
    $region39: #{tpu_custom_call.1} parent=5 // pred_region
      %s193 = ssub.s32 %s11, 1
      %s194 = smul.u32 2, %s16
      %p195 = scmp.lt.s32.totalorder %s194, 7
      %s196 = scalar_select %p195, %s194, 7
      %s197 = smul.addr %s196, 8
      %s198 = scalar_lea.vmem %s0, %s197
      %p199 = pneg %p37
      %p200 = pneg %p34
      %p201 = pneg %p58
      %p202 = pneg %p55
      %p203 = pneg %p79
      %p204 = pneg %p76
      %p205 = pneg %p100
      %p206 = pneg %p97
      %p207 = pneg %p121
      %p208 = pneg %p118
      %p209 = pneg %p147
      %p210 = pneg %p144
      %s211 = smul.u32 2, %s16
      %p212 = scmp.lt.s32.totalorder %s211, 7
      %s213 = scalar_select %p212, %s211, 7
      %s214 = smul.addr %s213, 8
      %s215 = scalar_lea.vmem %s5, %s214
      %s216 = smul.u32 2, %s16
      %p217 = scmp.lt.s32.totalorder %s216, 7
      %s218 = scalar_select %p217, %s216, 7
      %s219 = smul.addr %s218, 8
      %s220 = scalar_lea.vmem %s0, %s219
      %s221 = smul.u32 2, %s16
      %s222 = smul.u32 2, %s16
      %p223 = scmp.lt.s32.totalorder %s222, 7
      %s224 = scalar_select %p223, %s222, 7
      %s225 = smul.addr %s224, 8
      %s226 = scalar_lea.vmem %s5, %s225
      %s227 = smul.u32 2, %s16
      %v229 = vld [vmem:[%s220] sm:$0xff]
      %v230 = vld [vmem:[%s220 + $0x8] sm:$0xff]
      %v231 = vpack.c.bf16 %v230, %v229
      %v232 = vld [vmem:[%s1] sm:$0xf]
      %v233 = vld [vmem:[%s1 + $0x4] sm:$0xf]
      %v234 = vld [vmem:[%s1 + $0x8] sm:$0xf]
      %v235 = vld [vmem:[%s1 + $0xc] sm:$0xf]
      %v236 = vld [vmem:[%s2] sm:$0x1]
      %v238 = vperm.slane %v236, 0
      %v244 = vunpack.c.l.b16 %v232
      %v245 = vunpack.c.l.b16 %v233
      %v246 = vunpack.c.l.b16 %v234
      %v247 = vunpack.c.l.b16 %v235
      %v248 = vpack.c.b16 %v245, %v244
      %v249 = vpack.c.b16 %v247, %v246
      %vm252 = vcmask 261120
      %v254 = vsel %vm252, %v231, 0
      %256 = vmatpush.bf16.msra.mxu0 0
      %257 = vmatpush.bf16.msra.mxu0 0
      %258 = vmatpush.bf16.msra.mxu0 0
      %259 = vmatpush.bf16.msra.mxu0 0
      %260 = vmatpush.bf16.msra.mxu0 0
      %261 = vmatpush.bf16.msra.mxu0 0
      %262 = vmatpush.bf16.msra.mxu0 %v249
      %263 = vmatpush.bf16.msra.mxu0 %v248
      %264 = vmatmul.bf16.gmra.mxu0 %v254
      %v265 = vpop.f32.mrf.mxu0
      %v266 = vadd.f32 %v238, %v265
      %v267 = vpop.f32.mrf.mxu0
      %v268 = vadd.f32 %v238, %v267
      %269 = vdwg.mxu0
      %v270 = vmax.f32 %v266, 0.0
      %v271 = vmax.f32 %v268, 0.0
      %v272 = vpack.c.bf16 %v271, %v270
      %v273 = vld [vmem:[%s3] sm:$0xf]
      %v274 = vld [vmem:[%s3 + $0x4] sm:$0xf]
      %v275 = vld [vmem:[%s3 + $0x8] sm:$0xf]
      %v276 = vld [vmem:[%s3 + $0xc] sm:$0xf]
      %v277 = vld [vmem:[%s3 + $0x10] sm:$0xf]
      %v278 = vld [vmem:[%s3 + $0x14] sm:$0xf]
      %v279 = vld [vmem:[%s3 + $0x18] sm:$0xf]
      %v280 = vld [vmem:[%s3 + $0x1c] sm:$0xf]
      %v281 = vld [vmem:[%s4] sm:$0x1]
      %v283 = vperm.slane %v281, 0
      %v293 = vunpack.c.l.b16 %v273
      %v294 = vunpack.c.l.b16 %v274
      %v295 = vunpack.c.l.b16 %v275
      %v296 = vunpack.c.l.b16 %v276
      %v297 = vunpack.c.l.b16 %v277
      %v298 = vunpack.c.l.b16 %v278
      %v299 = vunpack.c.l.b16 %v279
      %v300 = vunpack.c.l.b16 %v280
      %v301 = vpack.c.b16 %v294, %v293
      %v302 = vpack.c.b16 %v296, %v295
      %v303 = vpack.c.b16 %v298, %v297
      %v304 = vpack.c.b16 %v300, %v299
      %vm309 = vcmask 523264
      %v311 = vsel %vm309, %v272, 0
      %313 = vmatpush.bf16.msra.mxu0 0
      %314 = vmatpush.bf16.msra.mxu0 0
      %315 = vmatpush.bf16.msra.mxu0 0
      %316 = vmatpush.bf16.msra.mxu0 0
      %317 = vmatpush.bf16.msra.mxu0 %v304
      %318 = vmatpush.bf16.msra.mxu0 %v303
      %319 = vmatpush.bf16.msra.mxu0 %v302
      %320 = vmatpush.bf16.msra.mxu0 %v301
      %321 = vmatmul.bf16.gmra.mxu0 %v311
      %v322 = vpop.f32.mrf.mxu0
      %v323 = vadd.f32 %v283, %v322
      %v324 = vpop.f32.mrf.mxu0
      %v325 = vadd.f32 %v283, %v324
      %326 = vdwg.mxu0
      %vm327 = vcmask 130048
      %328 = vst.msk [vmem:[%s226] sm:$0xff] %vm327, %v323
      %329 = vst.msk [vmem:[%s226 + $0x8] sm:$0xff] %vm327, %v325
      %s330 = smul.u32 2, %s16
      %p331 = scmp.lt.s32.totalorder %s330, 7
      %s332 = scalar_select %p331, %s330, 7
      %s333 = smul.addr %s332, 8
      %s334 = scalar_lea.vmem %s5, %s333
      // Predicated region
      $region41: #{tpu_custom_call.1} parent=39 // pred_check
        %p335 = pneg %p144
      $region42: #{tpu_custom_call.1} parent=39 // pred_check_branch
        %337 = sbr.rel (%p335) target = $region44
      $region43: #{tpu_custom_call.1} parent=39 // pred_region
        %s338 = smul.u32 2, %s16
      $region44: #{tpu_custom_call.1} parent=39 // pred_fallthru
        _
    $region40: #{tpu_custom_call.1} parent=5 // pred_fallthru
      _
    %p339 = scmp.le.s32.totalorder 2, %s11
    // Predicated region
    $region45: #{tpu_custom_call.1} parent=5 // pred_check
      %p340 = pneg %p339
    $region46: #{tpu_custom_call.1} parent=5 // pred_check_branch
      %342 = sbr.rel (%p340) target = $region48
    $region47: #{tpu_custom_call.1} parent=5 // pred_region
      %s343 = ssub.s32 %s11, 2
      // Predicated region
      $region49: #{tpu_custom_call.1} parent=47 // pred_check
        %p344 = pneg %p150
      $region50: #{tpu_custom_call.1} parent=47 // pred_check_branch
        %346 = sbr.rel (%p344) target = $region52
      $region51: #{tpu_custom_call.1} parent=47 // pred_region
        %s347 = smul.u32 2, %s17
        %p348 = scmp.lt.s32.totalorder %s347, 7
        %s349 = scalar_select %p348, %s347, 7
        %s350 = smul.addr %s349, 8
        %s351 = scalar_lea.vmem %s5, %s350
      $region52: #{tpu_custom_call.1} parent=47 // pred_fallthru
        _
    $region48: #{tpu_custom_call.1} parent=5 // pred_fallthru
      _
  $region6: #{tpu_custom_call.1} parent=0 // loop_footer
    %s15 = sadd.s32 1, %s11
  $region7: #{tpu_custom_call.1} parent=0 // loop_footer_branch
    %10 = sbr.rel target = $region3
  $region8: #{tpu_custom_call.1} parent=0 // loop_exit
    _

// kernel: tpu_custom_call.1
$region0: #{tpu_custom_call.1}
  #allocation0 [shape = 'u32[]', space=smem, size = 0x4, offset = 0x4, fixed_abs, tag = 'smem constant byte address 0x4 - core index']
  #allocation1 [shape = 'u32[72,128]{1,0:T(1,128)}', space=vmem, size = 0x9000, scoped, tag = 'internal scratch']
  %s0 = inlined_call_operand.vmem [shape: f32[64,32], index: 0, kind: input, shape index: {}]
  %s1 = inlined_call_operand.vmem [shape: bf16[32,64], index: 1, kind: input, shape index: {}]
  %s2 = inlined_call_operand.vmem [shape: f32[1,64], index: 2, kind: input, shape index: {}]
  %s3 = inlined_call_operand.vmem [shape: bf16[64,16], index: 3, kind: input, shape index: {}]
  %s4 = inlined_call_operand.vmem [shape: f32[1,16], index: 4, kind: input, shape index: {}]
  %s5 = inlined_call_operand.vmem [shape: f32[64,16], index: 5, kind: output, shape index: {}]
  %s6 = sld [smem:[#allocation0]]
  $region53: #{tpu_custom_call.1} parent=0
    _
  %s8 = ssub.s32 1, %s6
  %s9 = scalar_select 0, %s8, %s6
  loop: start=0, step=1, limit=6
  $region2: #{tpu_custom_call.1} parent=0 // loop_pre_header
    _
  $region3: #{tpu_custom_call.1} parent=0 // loop_header
    %s11 = sphi 0, %s15
    %p12 = scmp.ge.s32.totalorder %s11, 6
    %s21 = sphi 0, %s23
    %s24 = sphi 0, %s21
    %s25 = sphi 0, %s24
    %s41 = sphi 0, %s25
    %s45 = sphi 0, %s45
    %s47 = sphi 0, %s45
    %s48 = sphi 0, %s47
    %s62 = sphi 0, %s48
    %s66 = sphi 0, %s66
    %s68 = sphi 0, %s66
    %s69 = sphi 0, %s68
    %s83 = sphi 0, %s69
    %s87 = sphi 0, %s87
    %s89 = sphi 0, %s87
    %s90 = sphi 0, %s89
    %s104 = sphi 0, %s90
    %s108 = sphi 0, %s108
    %s110 = sphi 0, %s108
    %s111 = sphi 0, %s110
    %s125 = sphi 0, %s111
    %s131 = sphi 0, %s133
    %s134 = sphi 0, %s131
    %s135 = sphi 0, %s134
    %s151 = sphi 0, %s135
  $region4: #{tpu_custom_call.1} parent=0 // loop_header_branch
    %14 = sbr.rel (%p12) target = $region8
  $region5: #{tpu_custom_call.1} parent=0 // loop_body
    %s16 = ssub.s32 %s11, 1
    %s17 = ssub.s32 %s11, 2
    %s18 = sadd.s32 %s11, 1
    %s19 = ssub.s32 %s11, %s18
    %p20 = scmp.eq.s32.totalorder %s19, 0
    %s22 = sadd.s32 %s21, 1
    %s23 = scalar_select %p20, %s21, %s22
    %p26 = pneg %p20
    %p27 = scmp.eq.s32.totalorder %s11, 3
    %p28 = por %p26, %p27
    %p29 = scmp.ne.s32.totalorder %s21, %s24
    %p30 = scmp.eq.s32.totalorder %s11, 0
    %p31 = por %p29, %p30
    %p32 = scmp.ne.s32.totalorder %s21, %s24
    %p33 = scmp.eq.s32.totalorder %s16, 3
    %p34 = por %p32, %p33
    %p35 = scmp.ne.s32.totalorder %s24, %s25
    %p36 = scmp.eq.s32.totalorder %s16, 0
    %p37 = por %p35, %p36
    %p38 = scmp.ne.s32.totalorder %s24, %s25
    %p39 = scmp.eq.s32.totalorder %s17, 3
    %p40 = por %p38, %p39
    %p42 = scmp.ne.s32.totalorder %s25, %s41
    %p43 = scmp.eq.s32.totalorder %s17, 0
    %p44 = por %p42, %p43
    %s46 = sadd.s32 %s45, 1
    %p49 = scmp.eq.s32.totalorder %s11, 3
    %p50 = scmp.ne.s32.totalorder %s45, %s47
    %p51 = scmp.eq.s32.totalorder %s11, 0
    %p52 = por %p50, %p51
    %p53 = scmp.ne.s32.totalorder %s45, %s47
    %p54 = scmp.eq.s32.totalorder %s16, 3
    %p55 = por %p53, %p54
    %p56 = scmp.ne.s32.totalorder %s47, %s48
    %p57 = scmp.eq.s32.totalorder %s16, 0
    %p58 = por %p56, %p57
    %p59 = scmp.ne.s32.totalorder %s47, %s48
    %p60 = scmp.eq.s32.totalorder %s17, 3
    %p61 = por %p59, %p60
    %p63 = scmp.ne.s32.totalorder %s48, %s62
    %p64 = scmp.eq.s32.totalorder %s17, 0
    %p65 = por %p63, %p64
    %s67 = sadd.s32 %s66, 1
    %p70 = scmp.eq.s32.totalorder %s11, 3
    %p71 = scmp.ne.s32.totalorder %s66, %s68
    %p72 = scmp.eq.s32.totalorder %s11, 0
    %p73 = por %p71, %p72
    %p74 = scmp.ne.s32.totalorder %s66, %s68
    %p75 = scmp.eq.s32.totalorder %s16, 3
    %p76 = por %p74, %p75
    %p77 = scmp.ne.s32.totalorder %s68, %s69
    %p78 = scmp.eq.s32.totalorder %s16, 0
    %p79 = por %p77, %p78
    %p80 = scmp.ne.s32.totalorder %s68, %s69
    %p81 = scmp.eq.s32.totalorder %s17, 3
    %p82 = por %p80, %p81
    %p84 = scmp.ne.s32.totalorder %s69, %s83
    %p85 = scmp.eq.s32.totalorder %s17, 0
    %p86 = por %p84, %p85
    %s88 = sadd.s32 %s87, 1
    %p91 = scmp.eq.s32.totalorder %s11, 3
    %p92 = scmp.ne.s32.totalorder %s87, %s89
    %p93 = scmp.eq.s32.totalorder %s11, 0
    %p94 = por %p92, %p93
    %p95 = scmp.ne.s32.totalorder %s87, %s89
    %p96 = scmp.eq.s32.totalorder %s16, 3
    %p97 = por %p95, %p96
    %p98 = scmp.ne.s32.totalorder %s89, %s90
    %p99 = scmp.eq.s32.totalorder %s16, 0
    %p100 = por %p98, %p99
    %p101 = scmp.ne.s32.totalorder %s89, %s90
    %p102 = scmp.eq.s32.totalorder %s17, 3
    %p103 = por %p101, %p102
    %p105 = scmp.ne.s32.totalorder %s90, %s104
    %p106 = scmp.eq.s32.totalorder %s17, 0
    %p107 = por %p105, %p106
    %s109 = sadd.s32 %s108, 1
    %p112 = scmp.eq.s32.totalorder %s11, 3
    %p113 = scmp.ne.s32.totalorder %s108, %s110
    %p114 = scmp.eq.s32.totalorder %s11, 0
    %p115 = por %p113, %p114
    %p116 = scmp.ne.s32.totalorder %s108, %s110
    %p117 = scmp.eq.s32.totalorder %s16, 3
    %p118 = por %p116, %p117
    %p119 = scmp.ne.s32.totalorder %s110, %s111
    %p120 = scmp.eq.s32.totalorder %s16, 0
    %p121 = por %p119, %p120
    %p122 = scmp.ne.s32.totalorder %s110, %s111
    %p123 = scmp.eq.s32.totalorder %s17, 3
    %p124 = por %p122, %p123
    %p126 = scmp.ne.s32.totalorder %s111, %s125
    %p127 = scmp.eq.s32.totalorder %s17, 0
    %p128 = por %p126, %p127
    %s129 = ssub.s32 %s11, %s18
    %p130 = scmp.eq.s32.totalorder %s129, 0
    %s132 = sadd.s32 %s131, 1
    %s133 = scalar_select %p130, %s131, %s132
    %p136 = pneg %p130
    %p137 = scmp.eq.s32.totalorder %s11, 3
    %p138 = por %p136, %p137
    %p139 = scmp.ne.s32.totalorder %s131, %s134
    %p140 = scmp.eq.s32.totalorder %s11, 0
    %p141 = por %p139, %p140
    %p142 = scmp.ne.s32.totalorder %s131, %s134
    %p143 = scmp.eq.s32.totalorder %s16, 3
    %p144 = por %p142, %p143
    %p145 = scmp.ne.s32.totalorder %s134, %s135
    %p146 = scmp.eq.s32.totalorder %s16, 0
    %p147 = por %p145, %p146
    %p148 = scmp.ne.s32.totalorder %s134, %s135
    %p149 = scmp.eq.s32.totalorder %s17, 3
    %p150 = por %p148, %p149
    %p152 = scmp.ne.s32.totalorder %s135, %s151
    %p153 = scmp.eq.s32.totalorder %s17, 0
    %p154 = por %p152, %p153
    %p155 = scmp.le.s32.totalorder 1, %s11
    %p156 = scmp.lt.s32.totalorder %s11, 5
    %p157 = pnand %p155, %p156
    %p158 = pneg %p157
    // Predicated region
    $region9: #{tpu_custom_call.1} parent=5 // pred_check
      _
    $region10: #{tpu_custom_call.1} parent=5 // pred_check_branch
      %160 = sbr.rel (%p157) target = $region12
    $region11: #{tpu_custom_call.1} parent=5 // pred_region
      %s161 = ssub.s32 %s11, 1
      // Predicated region
      $region13: #{tpu_custom_call.1} parent=11 // pred_check
        %p162 = pneg %p58
      $region14: #{tpu_custom_call.1} parent=11 // pred_check_branch
        %164 = sbr.rel (%p162) target = $region16
      $region15: #{tpu_custom_call.1} parent=11 // pred_region
        _
      $region16: #{tpu_custom_call.1} parent=11 // pred_fallthru
        _
      // Predicated region
      $region17: #{tpu_custom_call.1} parent=11 // pred_check
        %p165 = pneg %p79
      $region18: #{tpu_custom_call.1} parent=11 // pred_check_branch
        %167 = sbr.rel (%p165) target = $region20
      $region19: #{tpu_custom_call.1} parent=11 // pred_region
        _
      $region20: #{tpu_custom_call.1} parent=11 // pred_fallthru
        _
      // Predicated region
      $region21: #{tpu_custom_call.1} parent=11 // pred_check
        %p168 = pneg %p100
      $region22: #{tpu_custom_call.1} parent=11 // pred_check_branch
        %170 = sbr.rel (%p168) target = $region24
      $region23: #{tpu_custom_call.1} parent=11 // pred_region
        _
      $region24: #{tpu_custom_call.1} parent=11 // pred_fallthru
        _
      // Predicated region
      $region25: #{tpu_custom_call.1} parent=11 // pred_check
        %p171 = pneg %p121
      $region26: #{tpu_custom_call.1} parent=11 // pred_check_branch
        %173 = sbr.rel (%p171) target = $region28
      $region27: #{tpu_custom_call.1} parent=11 // pred_region
        _
      $region28: #{tpu_custom_call.1} parent=11 // pred_fallthru
        _
    $region12: #{tpu_custom_call.1} parent=5 // pred_fallthru
      _
    %p174 = scmp.lt.s32.totalorder %s11, 4
    // Predicated region
    $region29: #{tpu_custom_call.1} parent=5 // pred_check
      %p175 = pneg %p174
    $region30: #{tpu_custom_call.1} parent=5 // pred_check_branch
      %177 = sbr.rel (%p175) target = $region32
    $region31: #{tpu_custom_call.1} parent=5 // pred_region
      // Predicated region
      $region33: #{tpu_custom_call.1} parent=31 // pred_check
        %p178 = pneg %p31
      $region34: #{tpu_custom_call.1} parent=31 // pred_check_branch
        %180 = sbr.rel (%p178) target = $region36
      $region35: #{tpu_custom_call.1} parent=31 // pred_region
        %s181 = smul.u32 2, %s11
        %p182 = scmp.lt.s32.totalorder %s181, 7
        %s183 = scalar_select %p182, %s181, 7
        %s184 = smul.addr %s183, 8
        %s185 = scalar_lea.vmem %s0, %s184
        %s186 = smul.u32 2, %s11
      $region36: #{tpu_custom_call.1} parent=31 // pred_fallthru
        _
    $region32: #{tpu_custom_call.1} parent=5 // pred_fallthru
      _
    %p187 = scmp.le.s32.totalorder 1, %s11
    %p188 = scmp.lt.s32.totalorder %s11, 5
    %p189 = pnand %p187, %p188
    %p190 = pneg %p189
    // Predicated region
    $region37: #{tpu_custom_call.1} parent=5 // pred_check
      _
    $region38: #{tpu_custom_call.1} parent=5 // pred_check_branch
      %192 = sbr.rel (%p189) target = $region40
    $region39: #{tpu_custom_call.1} parent=5 // pred_region
      %s193 = ssub.s32 %s11, 1
      %s194 = smul.u32 2, %s16
      %p195 = scmp.lt.s32.totalorder %s194, 7
      %s196 = scalar_select %p195, %s194, 7
      %s197 = smul.addr %s196, 8
      %s198 = scalar_lea.vmem %s0, %s197
      %p199 = pneg %p37
      %p200 = pneg %p34
      %p201 = pneg %p58
      %p202 = pneg %p55
      %p203 = pneg %p79
      %p204 = pneg %p76
      %p205 = pneg %p100
      %p206 = pneg %p97
      %p207 = pneg %p121
      %p208 = pneg %p118
      %p209 = pneg %p147
      %p210 = pneg %p144
      %s211 = smul.u32 2, %s16
      %p212 = scmp.lt.s32.totalorder %s211, 7
      %s213 = scalar_select %p212, %s211, 7
      %s214 = smul.addr %s213, 8
      %s215 = scalar_lea.vmem %s5, %s214
      %s216 = smul.u32 2, %s16
      %p217 = scmp.lt.s32.totalorder %s216, 7
      %s218 = scalar_select %p217, %s216, 7
      %s219 = smul.addr %s218, 8
      %s220 = scalar_lea.vmem %s0, %s219
      %s221 = smul.u32 2, %s16
      %s222 = smul.u32 2, %s16
      %p223 = scmp.lt.s32.totalorder %s222, 7
      %s224 = scalar_select %p223, %s222, 7
      %s225 = smul.addr %s224, 8
      %s226 = scalar_lea.vmem %s5, %s225
      %s227 = smul.u32 2, %s16
      %v229 = vld [vmem:[%s220] sm:$0xff]
      %v230 = vld [vmem:[%s220 + $0x8] sm:$0xff]
      %v231 = vpack.c.bf16 %v230, %v229
      %v232 = vld [vmem:[%s1] sm:$0xf]
      %v233 = vld [vmem:[%s1 + $0x4] sm:$0xf]
      %v234 = vld [vmem:[%s1 + $0x8] sm:$0xf]
      %v235 = vld [vmem:[%s1 + $0xc] sm:$0xf]
      %v236 = vld [vmem:[%s2] sm:$0x1]
      %v238 = vperm.slane %v236, 0
      %v244 = vunpack.c.l.b16 %v232
      %v245 = vunpack.c.l.b16 %v233
      %v246 = vunpack.c.l.b16 %v234
      %v247 = vunpack.c.l.b16 %v235
      %v248 = vpack.c.b16 %v245, %v244
      %v249 = vpack.c.b16 %v247, %v246
      %vm252 = vcmask 261120
      %v254 = vsel %vm252, %v231, 0
      %256 = vmatpush.bf16.msra.mxu0 0
      %257 = vmatpush.bf16.msra.mxu0 0
      %258 = vmatpush.bf16.msra.mxu0 0
      %259 = vmatpush.bf16.msra.mxu0 0
      %260 = vmatpush.bf16.msra.mxu0 0
      %261 = vmatpush.bf16.msra.mxu0 0
      %262 = vmatpush.bf16.msra.mxu0 %v249
      %263 = vmatpush.bf16.msra.mxu0 %v248
      %264 = vmatmul.bf16.gmra.mxu0 %v254
      %v265 = vpop.f32.mrf.mxu0
      %v266 = vadd.f32 %v238, %v265
      %v267 = vpop.f32.mrf.mxu0
      %v268 = vadd.f32 %v238, %v267
      %269 = vdwg.mxu0
      %v270 = vmax.f32 %v266, 0.0
      %v271 = vmax.f32 %v268, 0.0
      %v272 = vpack.c.bf16 %v271, %v270
      %v273 = vld [vmem:[%s3] sm:$0xf]
      %v274 = vld [vmem:[%s3 + $0x4] sm:$0xf]
      %v275 = vld [vmem:[%s3 + $0x8] sm:$0xf]
      %v276 = vld [vmem:[%s3 + $0xc] sm:$0xf]
      %v277 = vld [vmem:[%s3 + $0x10] sm:$0xf]
      %v278 = vld [vmem:[%s3 + $0x14] sm:$0xf]
      %v279 = vld [vmem:[%s3 + $0x18] sm:$0xf]
      %v280 = vld [vmem:[%s3 + $0x1c] sm:$0xf]
      %v281 = vld [vmem:[%s4] sm:$0x1]
      %v283 = vperm.slane %v281, 0
      %v293 = vunpack.c.l.b16 %v273
      %v294 = vunpack.c.l.b16 %v274
      %v295 = vunpack.c.l.b16 %v275
      %v296 = vunpack.c.l.b16 %v276
      %v297 = vunpack.c.l.b16 %v277
      %v298 = vunpack.c.l.b16 %v278
      %v299 = vunpack.c.l.b16 %v279
      %v300 = vunpack.c.l.b16 %v280
      %v301 = vpack.c.b16 %v294, %v293
      %v302 = vpack.c.b16 %v296, %v295
      %v303 = vpack.c.b16 %v298, %v297
      %v304 = vpack.c.b16 %v300, %v299
      %vm309 = vcmask 523264
      %v311 = vsel %vm309, %v272, 0
      %313 = vmatpush.bf16.msra.mxu0 0
      %314 = vmatpush.bf16.msra.mxu0 0
      %315 = vmatpush.bf16.msra.mxu0 0
      %316 = vmatpush.bf16.msra.mxu0 0
      %317 = vmatpush.bf16.msra.mxu0 %v304
      %318 = vmatpush.bf16.msra.mxu0 %v303
      %319 = vmatpush.bf16.msra.mxu0 %v302
      %320 = vmatpush.bf16.msra.mxu0 %v301
      %321 = vmatmul.bf16.gmra.mxu0 %v311
      %v322 = vpop.f32.mrf.mxu0
      %v323 = vadd.f32 %v283, %v322
      %v324 = vpop.f32.mrf.mxu0
      %v325 = vadd.f32 %v283, %v324
      %326 = vdwg.mxu0
      %vm327 = vcmask 130048
      %328 = vst.msk [vmem:[%s226] sm:$0xff] %vm327, %v323
      %329 = vst.msk [vmem:[%s226 + $0x8] sm:$0xff] %vm327, %v325
      %s330 = smul.u32 2, %s16
      %p331 = scmp.lt.s32.totalorder %s330, 7
      %s332 = scalar_select %p331, %s330, 7
      %s333 = smul.addr %s332, 8
      %s334 = scalar_lea.vmem %s5, %s333
      // Predicated region
      $region41: #{tpu_custom_call.1} parent=39 // pred_check
        %p335 = pneg %p144
      $region42: #{tpu_custom_call.1} parent=39 // pred_check_branch
        %337 = sbr.rel (%p335) target = $region44
      $region43: #{tpu_custom_call.1} parent=39 // pred_region
        %s338 = smul.u32 2, %s16
      $region44: #{tpu_custom_call.1} parent=39 // pred_fallthru
        _
    $region40: #{tpu_custom_call.1} parent=5 // pred_fallthru
      _
    %p339 = scmp.le.s32.totalorder 2, %s11
    // Predicated region
    $region45: #{tpu_custom_call.1} parent=5 // pred_check
      %p340 = pneg %p339
    $region46: #{tpu_custom_call.1} parent=5 // pred_check_branch
      %342 = sbr.rel (%p340) target = $region48
    $region47: #{tpu_custom_call.1} parent=5 // pred_region
      %s343 = ssub.s32 %s11, 2
      // Predicated region
      $region49: #{tpu_custom_call.1} parent=47 // pred_check
        %p344 = pneg %p150
      $region50: #{tpu_custom_call.1} parent=47 // pred_check_branch
        %346 = sbr.rel (%p344) target = $region52
      $region51: #{tpu_custom_call.1} parent=47 // pred_region
        %s347 = smul.u32 2, %s17
        %p348 = scmp.lt.s32.totalorder %s347, 7
        %s349 = scalar_select %p348, %s347, 7
        %s350 = smul.addr %s349, 8
        %s351 = scalar_lea.vmem %s5, %s350
      $region52: #{tpu_custom_call.1} parent=47 // pred_fallthru
        _
    $region48: #{tpu_custom_call.1} parent=5 // pred_fallthru
      _
  $region6: #{tpu_custom_call.1} parent=0 // loop_footer
    %s15 = sadd.s32 1, %s11
  $region7: #{tpu_custom_call.1} parent=0 // loop_footer_branch
    %10 = sbr.rel target = $region3
  $region8: #{tpu_custom_call.1} parent=0 // loop_exit
    _

</llo_original>
